<compile_context>
chip_gen: v6e
topology: v6e:2x2x1
jax: 0.10.0
libtpu: 0.0.40
codegen_flags: <defaults>
</compile_context>

<pallas_src>
import functools

import jax
import jax.numpy as jnp
from jax.experimental import pallas as pl
from jax.experimental.pallas import tpu as pltpu


def _round_up(x: int, m: int) -> int:
    return ((x + m - 1) // m) * m


def _margin_loss_kernel(margin_ref, s_ref, psum_ref, *, tile_rows):
    # margin_ref : SMEM (1, 1) f32
    # s_ref      : VMEM (2, tile_rows, 128) f32  [0]=p_score tile, [1]=n_score tile
    # psum_ref   : VMEM (1, 8, 128) f32          per-tile partial sum (one vreg)
    margin = margin_ref[0, 0]
    clipped = jnp.maximum(s_ref[0] - s_ref[1], -margin)   # torch.max(p - n, -margin)
    # (tile_rows, 128) -> (tile_rows//8, 8, 128) -> (8, 128): layout-preserving
    # reshape + pure VALU adds (no cross-lane XLU work, no per-tile divide).
    psum_ref[...] = clipped.reshape(tile_rows // 8, 8, 128).sum(axis=0)[None, :, :]


def _xla_margin_loss(score, margin, n):
    hinge = jnp.maximum(score[:n] - score[n:], -margin)
    return (margin + hinge.mean()).reshape(1)


def margin_loss(score: jax.Array, margin, *, tile_rows: int = 4096,
                min_pallas_elems: int = 262144) -> jax.Array:
    """score: (2*N,) scores, positives first.  Returns shape (1,) f32 (as torch)."""
    assert score.ndim == 1 and score.shape[0] % 2 == 0
    n = score.shape[0] // 2
    score = score.astype(jnp.float32)
    margin = jnp.asarray(margin, dtype=jnp.float32)

    # XLA fallbacks:
    #   * tiny inputs: fixed pallas_call / DMA setup cost beats the work;
    #   * N % 128 != 0: a zero-copy (2, M, 128) view of the original buffer is
    #     impossible, and any wrapper-side re-pack would ~3x HBM traffic for a
    #     bandwidth-bound op, so the fused XLA hinge+mean (already at roofline)
    #     is the faster choice.
    # TODO(synk): keep unaligned N on the Pallas path via memory_space=pl.ANY +
    # manual double-buffered DMA from element offsets 0 and N if it ever matters.
    if score.shape[0] < min_pallas_elems or n % 128 != 0 or n < 1024:
        return _xla_margin_loss(score, margin, n)

    mp = n // 128                                    # 128-lane rows per half
    tr = max(8, _round_up(int(tile_rows), 8))
    tr = min(max(tr, 512), 8192)                     # floor 512 / cap 8192 rows
    tr = max(8, min(tr, (mp // 8) * 8))              # at most the 8-aligned rows
    num_tiles = mp // tr                             # full tiles only -> no masking
    bulk = num_tiles * tr * 128                      # elems per half done in Pallas

    # Zero-copy view of the ORIGINAL buffer: [0] = p_score rows, [1] = n_score rows.
    s3 = score.reshape(2, mp, 128)
    margin_arr = jnp.reshape(margin, (1, 1))

    # Per-step VMEM footprint: the (2, tr, 128) input, double-buffered. Only
    # raise the scoped-VMEM limit when it would overflow v5e's 16 MiB default.
    step_bytes = 2 * tr * 128 * 4
    compiler_kwargs = dict(
        # NOTE: on v7x, verify in xprof that the tile axis actually shards
        # across both TensorCores; if not, core-level semantics / core_map.
        dimension_semantics=("parallel",),
    )
    if 2 * step_bytes > 12 * 1024 * 1024:
        compiler_kwargs["vmem_limit_bytes"] = 2 * step_bytes + (8 << 20)

    kernel = functools.partial(_margin_loss_kernel, tile_rows=tr)

    partials = pl.pallas_call(
        kernel,
        out_shape=jax.ShapeDtypeStruct((num_tiles, 8, 128), jnp.float32),
        grid_spec=pltpu.PrefetchScalarGridSpec(
            num_scalar_prefetch=0,
            grid=(num_tiles,),
            in_specs=[
                # margin scalar, resident in SMEM for the whole grid
                pl.BlockSpec((1, 1), lambda i: (0, 0), memory_space=pltpu.SMEM),
                # one dense (2, tr, 128) tile holding both halves per step
                pl.BlockSpec((2, tr, 128), lambda i: (0, i, 0)),
            ],
            out_specs=pl.BlockSpec((1, 8, 128), lambda i: (i, 0, 0)),
        ),
        compiler_params=pltpu.CompilerParams(**compiler_kwargs),
    )(margin_arr, s3)

    total = jnp.sum(partials)
    if bulk < n:
        # Ragged tail (< tr*128 elements per half): fold into the XLA epilogue,
        # reading straight from the original buffer (no kernel-side masking,
        # no extra full-size copies).
        p_tail = score[bulk:n]
        q_tail = score[n + bulk:]
        total = total + jnp.sum(jnp.maximum(p_tail - q_tail, -margin))

    # Tiny scalar epilogue: add margin, divide by the TRUE N. Shape (1,) as torch.
    return (margin + total * (1.0 / n)).reshape(1)


def _reference(score, margin):
    n = score.shape[0] // 2
    m = jnp.asarray(margin, dtype=jnp.float32)
    return m + jnp.maximum(score[:n].astype(jnp.float32)
                           - score[n:].astype(jnp.float32), -m).mean()


if __name__ == "__main__":
    key = jax.random.PRNGKey(0)

    # (total_scores, margin, tile_rows) exercising:
    #   single-tile aligned zero-copy / aligned bulk + ragged XLA tail /
    #   multi-tile + negative margin + tile-floor clamp / tiny-input XLA path /
    #   unaligned-N XLA fallback.
    cases = [
        (262144, 1.0, 4096),
        (262656, 0.5, 4096),
        (524288, -0.25, 64),
        (2000, 2.0, 4096),
        (266000, 1.5, 4096),
    ]

    for idx, (total, margin_value, tr) in enumerate(cases):
        k = jax.random.fold_in(key, idx)
        score = jax.random.normal(k, (total,), dtype=jnp.float32)
        loss = jax.block_until_ready(margin_loss(score, margin_value, tile_rows=tr))
        ref = _reference(score, margin_value)
        assert loss.shape == (1,), (total, loss.shape)
        assert jnp.allclose(loss[0], ref, rtol=1e-4, atol=1e-4), (total, loss, ref)

    print("KERNEL_OK")
</pallas_src>

<mosaic_0001>
module attributes {stable_mosaic.version = 11 : i64} {
  func.func @_margin_loss_kernel(%arg0: i32, %arg1: memref<1x1xf32, #tpu.memory_space<smem>>, %arg2: memref<2x1024x128xf32, #tpu.memory_space<vmem>>, %arg3: memref<1x8x128xf32, #tpu.memory_space<vmem>>) attributes {dimension_semantics = [#tpu.dimension_semantics<parallel>], iteration_bounds = array<i64: 1>, scalar_prefetch = 0 : i64, scratch_operands = 0 : i64, tpu.core_type = #tpu.core_type<tc>, window_params = [{transform_indices = @transform_0, window_bounds = array<i64: 1, 1>}, {transform_indices = @transform_1, window_bounds = array<i64: 2, 1024, 128>}, {transform_indices = @transform_2, window_bounds = array<i64: 1, 8, 128>}]} {
    %c0 = arith.constant 0 : index
    %c0_0 = arith.constant 0 : index
    %0 = memref.load %arg1[%c0, %c0_0] : memref<1x1xf32, #tpu.memory_space<smem>>
    %c0_1 = arith.constant 0 : index
    %c0_2 = arith.constant 0 : index
    %c0_3 = arith.constant 0 : index
    %1 = vector.load %arg2[%c0_1, %c0_2, %c0_3] : memref<2x1024x128xf32, #tpu.memory_space<vmem>>, vector<1x1024x128xf32>
    %2 = vector.shape_cast %1 : vector<1x1024x128xf32> to vector<1024x128xf32>
    %c1 = arith.constant 1 : index
    %c0_4 = arith.constant 0 : index
    %c0_5 = arith.constant 0 : index
    %3 = vector.load %arg2[%c1, %c0_4, %c0_5] : memref<2x1024x128xf32, #tpu.memory_space<vmem>>, vector<1x1024x128xf32>
    %4 = vector.shape_cast %3 : vector<1x1024x128xf32> to vector<1024x128xf32>
    %5 = arith.subf %2, %4 : vector<1024x128xf32>
    %cst = arith.constant 0.000000e+00 : f32
    %6 = arith.subf %cst, %0 : f32
    %7 = vector.broadcast %6 : f32 to vector<1024x128xf32>
    %8 = arith.maximumf %5, %7 : vector<1024x128xf32>
    %9 = vector.shape_cast %8 : vector<1024x128xf32> to vector<128x8x128xf32>
    %cst_6 = arith.constant dense<0.000000e+00> : vector<8x128xf32>
    %10 = vector.multi_reduction <add>, %9, %cst_6 [0] : vector<128x8x128xf32> to vector<8x128xf32>
    %11 = vector.shape_cast %10 : vector<8x128xf32> to vector<1x8x128xf32>
    %c0_7 = arith.constant 0 : index
    %c0_8 = arith.constant 0 : index
    %c0_9 = arith.constant 0 : index
    %12 = vector.load %arg3[%c0_7, %c0_8, %c0_9] : memref<1x8x128xf32, #tpu.memory_space<vmem>>, vector<1x8x128xf32>
    tpu.vector_store %arg3[%c0_7, %c0_8, %c0_9], %11 {strides = array<i32>} : memref<1x8x128xf32, #tpu.memory_space<vmem>>, vector<1x8x128xf32>,
    return
  }
  func.func @transform_0(%arg0: i32) -> (i32, i32) {
    %c0_i32 = arith.constant 0 : i32
    %c0_i32_0 = arith.constant 0 : i32
    %c0_i32_1 = arith.constant 0 : i32
    return %c0_i32, %c0_i32_0 : i32, i32
  }
  func.func @transform_1(%arg0: i32) -> (i32, i32, i32) {
    %c0_i32 = arith.constant 0 : i32
    %c0_i32_0 = arith.constant 0 : i32
    %c0_i32_1 = arith.constant 0 : i32
    return %c0_i32, %arg0, %c0_i32_0 : i32, i32, i32
  }
  func.func @transform_2(%arg0: i32) -> (i32, i32, i32) {
    %c0_i32 = arith.constant 0 : i32
    %c0_i32_0 = arith.constant 0 : i32
    %c0_i32_1 = arith.constant 0 : i32
    return %arg0, %c0_i32, %c0_i32_0 : i32, i32, i32
  }
}

</mosaic_0001>

<llo_original>
// kernel: tpu_custom_call.1
$region0: #{tpu_custom_call.1}
  #allocation0 [shape = 'u32[]', space=smem, size = 0x4, offset = 0x4, fixed_abs, tag = 'smem constant byte address 0x4 - core index']
  #allocation1 [shape = 'u32[144,128]{1,0:T(1,128)}', space=vmem, size = 0x12000, scoped, tag = 'internal scratch']
  #allocation2 [shape = 'f32[1,1]{1,0:T(1,128)S(6)}', space=smem, size = 0x200, scoped, tag = 'scoped memory for tpu_custom_call.1']
  %s0 = inlined_call_operand.<no memory space> [shape: f32[1,1], index: 0, kind: input, shape index: {}]
  %s1 = inlined_call_operand.hbm [shape: f32[2,1024,128], index: 1, kind: input, shape index: {}]
  %s2 = inlined_call_operand.hbm [shape: f32[1,8,128], index: 2, kind: output, shape index: {}]
  %s3 = sld [smem:[#allocation0]]
  $region22: #{tpu_custom_call.1} parent=0
    _
  %s5 = ssub.s32 1, %s3
  %s6 = scalar_select 0, %s5, %s3
  %7 = sst [smem:[#allocation2]] %s0
  $region1: #{tpu_custom_call.1} parent=0
    #allocation3 [shape = 'u8[1048576]{0}', space=vmem, size = 0x100000, scoped, tag = 'input window, operand 1, single buffered']
    #allocation4 [shape = 's32[1]{0}', space=sflag, size = 0x4, scoped, tag = 'scoped memory for tpu_custom_call.1']
    #allocation5 [shape = 's32[1]{0}', space=sflag, size = 0x4, scoped, tag = 'scoped memory for tpu_custom_call.1']
    #allocation6 [shape = 'u8[4096]{0}', space=vmem, size = 0x1000, scoped, tag = 'output window, operand 0, single buffered']
    %8 = vsyncpa [#allocation4], 0
    %9 = vsyncpa [#allocation5], 0
    // Predicated region
    $region2: #{tpu_custom_call.1} parent=1 // pred_check
      _
    $region3: #{tpu_custom_call.1} parent=1 // pred_check_branch
      %11 = sbr.rel (0) target = $region5
    $region4: #{tpu_custom_call.1} parent=1 // pred_region
      _
    $region5: #{tpu_custom_call.1} parent=1 // pred_fallthru
      _
    // Predicated region
    $region6: #{tpu_custom_call.1} parent=1 // pred_check
      _
    $region7: #{tpu_custom_call.1} parent=1 // pred_check_branch
      %13 = sbr.rel (0) target = $region9
    $region8: #{tpu_custom_call.1} parent=1 // pred_region
      %s15 = ssub.s32 32768, 32768
      %16 = vsyncadd [#allocation4], %s15
      %s17 = sshll.u32 [#allocation3], 4
      %s18 = int_to_ptr.vmem [resolvable:$true] %s17
      %23 = dma.hbm_to_vmem [thread:$0]  %s1, 32768, %s18, [#allocation4], 128, 128, 8
    $region9: #{tpu_custom_call.1} parent=1 // pred_fallthru
      _
    // Predicated region
    $region10: #{tpu_custom_call.1} parent=1 // pred_check
      _
    $region11: #{tpu_custom_call.1} parent=1 // pred_check_branch
      %25 = sbr.rel (0) target = $region13
    $region12: #{tpu_custom_call.1} parent=1 // pred_region
      %26 = dma.done [#allocation4], 32768
    $region13: #{tpu_custom_call.1} parent=1 // pred_fallthru
      _
    %s27 = sld [smem:[#allocation2]]
    %v28 = vld [vmem:[#allocation3] sm:$0xff]
    %v29 = vld [vmem:[#allocation3 + $0x8] sm:$0xff]
    %v30 = vld [vmem:[#allocation3 + $0x10] sm:$0xff]
    %v31 = vld [vmem:[#allocation3 + $0x18] sm:$0xff]
    %v32 = vld [vmem:[#allocation3 + $0x20] sm:$0xff]
    %v33 = vld [vmem:[#allocation3 + $0x28] sm:$0xff]
    %v34 = vld [vmem:[#allocation3 + $0x30] sm:$0xff]
    %v35 = vld [vmem:[#allocation3 + $0x38] sm:$0xff]
    %v36 = vld [vmem:[#allocation3 + $0x40] sm:$0xff]
    %v37 = vld [vmem:[#allocation3 + $0x48] sm:$0xff]
    %v38 = vld [vmem:[#allocation3 + $0x50] sm:$0xff]
    %v39 = vld [vmem:[#allocation3 + $0x58] sm:$0xff]
    %v40 = vld [vmem:[#allocation3 + $0x60] sm:$0xff]
    %v41 = vld [vmem:[#allocation3 + $0x68] sm:$0xff]
    %v42 = vld [vmem:[#allocation3 + $0x70] sm:$0xff]
    %v43 = vld [vmem:[#allocation3 + $0x78] sm:$0xff]
    %v44 = vld [vmem:[#allocation3 + $0x80] sm:$0xff]
    %v45 = vld [vmem:[#allocation3 + $0x88] sm:$0xff]
    %v46 = vld [vmem:[#allocation3 + $0x90] sm:$0xff]
    %v47 = vld [vmem:[#allocation3 + $0x98] sm:$0xff]
    %v48 = vld [vmem:[#allocation3 + $0xa0] sm:$0xff]
    %v49 = vld [vmem:[#allocation3 + $0xa8] sm:$0xff]
    %v50 = vld [vmem:[#allocation3 + $0xb0] sm:$0xff]
    %v51 = vld [vmem:[#allocation3 + $0xb8] sm:$0xff]
    %v52 = vld [vmem:[#allocation3 + $0xc0] sm:$0xff]
    %v53 = vld [vmem:[#allocation3 + $0xc8] sm:$0xff]
    %v54 = vld [vmem:[#allocation3 + $0xd0] sm:$0xff]
    %v55 = vld [vmem:[#allocation3 + $0xd8] sm:$0xff]
    %v56 = vld [vmem:[#allocation3 + $0xe0] sm:$0xff]
    %v57 = vld [vmem:[#allocation3 + $0xe8] sm:$0xff]
    %v58 = vld [vmem:[#allocation3 + $0xf0] sm:$0xff]
    %v59 = vld [vmem:[#allocation3 + $0xf8] sm:$0xff]
    %v60 = vld [vmem:[#allocation3 + $0x100] sm:$0xff]
    %v61 = vld [vmem:[#allocation3 + $0x108] sm:$0xff]
    %v62 = vld [vmem:[#allocation3 + $0x110] sm:$0xff]
    %v63 = vld [vmem:[#allocation3 + $0x118] sm:$0xff]
    %v64 = vld [vmem:[#allocation3 + $0x120] sm:$0xff]
    %v65 = vld [vmem:[#allocation3 + $0x128] sm:$0xff]
    %v66 = vld [vmem:[#allocation3 + $0x130] sm:$0xff]
    %v67 = vld [vmem:[#allocation3 + $0x138] sm:$0xff]
    %v68 = vld [vmem:[#allocation3 + $0x140] sm:$0xff]
    %v69 = vld [vmem:[#allocation3 + $0x148] sm:$0xff]
    %v70 = vld [vmem:[#allocation3 + $0x150] sm:$0xff]
    %v71 = vld [vmem:[#allocation3 + $0x158] sm:$0xff]
    %v72 = vld [vmem:[#allocation3 + $0x160] sm:$0xff]
    %v73 = vld [vmem:[#allocation3 + $0x168] sm:$0xff]
    %v74 = vld [vmem:[#allocation3 + $0x170] sm:$0xff]
    %v75 = vld [vmem:[#allocation3 + $0x178] sm:$0xff]
    %v76 = vld [vmem:[#allocation3 + $0x180] sm:$0xff]
    %v77 = vld [vmem:[#allocation3 + $0x188] sm:$0xff]
    %v78 = vld [vmem:[#allocation3 + $0x190] sm:$0xff]
    %v79 = vld [vmem:[#allocation3 + $0x198] sm:$0xff]
    %v80 = vld [vmem:[#allocation3 + $0x1a0] sm:$0xff]
    %v81 = vld [vmem:[#allocation3 + $0x1a8] sm:$0xff]
    %v82 = vld [vmem:[#allocation3 + $0x1b0] sm:$0xff]
    %v83 = vld [vmem:[#allocation3 + $0x1b8] sm:$0xff]
    %v84 = vld [vmem:[#allocation3 + $0x1c0] sm:$0xff]
    %v85 = vld [vmem:[#allocation3 + $0x1c8] sm:$0xff]
    %v86 = vld [vmem:[#allocation3 + $0x1d0] sm:$0xff]
    %v87 = vld [vmem:[#allocation3 + $0x1d8] sm:$0xff]
    %v88 = vld [vmem:[#allocation3 + $0x1e0] sm:$0xff]
    %v89 = vld [vmem:[#allocation3 + $0x1e8] sm:$0xff]
    %v90 = vld [vmem:[#allocation3 + $0x1f0] sm:$0xff]
    %v91 = vld [vmem:[#allocation3 + $0x1f8] sm:$0xff]
    %v92 = vld [vmem:[#allocation3 + $0x200] sm:$0xff]
    %v93 = vld [vmem:[#allocation3 + $0x208] sm:$0xff]
    %v94 = vld [vmem:[#allocation3 + $0x210] sm:$0xff]
    %v95 = vld [vmem:[#allocation3 + $0x218] sm:$0xff]
    %v96 = vld [vmem:[#allocation3 + $0x220] sm:$0xff]
    %v97 = vld [vmem:[#allocation3 + $0x228] sm:$0xff]
    %v98 = vld [vmem:[#allocation3 + $0x230] sm:$0xff]
    %v99 = vld [vmem:[#allocation3 + $0x238] sm:$0xff]
    %v100 = vld [vmem:[#allocation3 + $0x240] sm:$0xff]
    %v101 = vld [vmem:[#allocation3 + $0x248] sm:$0xff]
    %v102 = vld [vmem:[#allocation3 + $0x250] sm:$0xff]
    %v103 = vld [vmem:[#allocation3 + $0x258] sm:$0xff]
    %v104 = vld [vmem:[#allocation3 + $0x260] sm:$0xff]
    %v105 = vld [vmem:[#allocation3 + $0x268] sm:$0xff]
    %v106 = vld [vmem:[#allocation3 + $0x270] sm:$0xff]
    %v107 = vld [vmem:[#allocation3 + $0x278] sm:$0xff]
    %v108 = vld [vmem:[#allocation3 + $0x280] sm:$0xff]
    %v109 = vld [vmem:[#allocation3 + $0x288] sm:$0xff]
    %v110 = vld [vmem:[#allocation3 + $0x290] sm:$0xff]
    %v111 = vld [vmem:[#allocation3 + $0x298] sm:$0xff]
    %v112 = vld [vmem:[#allocation3 + $0x2a0] sm:$0xff]
    %v113 = vld [vmem:[#allocation3 + $0x2a8] sm:$0xff]
    %v114 = vld [vmem:[#allocation3 + $0x2b0] sm:$0xff]
    %v115 = vld [vmem:[#allocation3 + $0x2b8] sm:$0xff]
    %v116 = vld [vmem:[#allocation3 + $0x2c0] sm:$0xff]
    %v117 = vld [vmem:[#allocation3 + $0x2c8] sm:$0xff]
    %v118 = vld [vmem:[#allocation3 + $0x2d0] sm:$0xff]
    %v119 = vld [vmem:[#allocation3 + $0x2d8] sm:$0xff]
    %v120 = vld [vmem:[#allocation3 + $0x2e0] sm:$0xff]
    %v121 = vld [vmem:[#allocation3 + $0x2e8] sm:$0xff]
    %v122 = vld [vmem:[#allocation3 + $0x2f0] sm:$0xff]
    %v123 = vld [vmem:[#allocation3 + $0x2f8] sm:$0xff]
    %v124 = vld [vmem:[#allocation3 + $0x300] sm:$0xff]
    %v125 = vld [vmem:[#allocation3 + $0x308] sm:$0xff]
    %v126 = vld [vmem:[#allocation3 + $0x310] sm:$0xff]
    %v127 = vld [vmem:[#allocation3 + $0x318] sm:$0xff]
    %v128 = vld [vmem:[#allocation3 + $0x320] sm:$0xff]
    %v129 = vld [vmem:[#allocation3 + $0x328] sm:$0xff]
    %v130 = vld [vmem:[#allocation3 + $0x330] sm:$0xff]
    %v131 = vld [vmem:[#allocation3 + $0x338] sm:$0xff]
    %v132 = vld [vmem:[#allocation3 + $0x340] sm:$0xff]
    %v133 = vld [vmem:[#allocation3 + $0x348] sm:$0xff]
    %v134 = vld [vmem:[#allocation3 + $0x350] sm:$0xff]
    %v135 = vld [vmem:[#allocation3 + $0x358] sm:$0xff]
    %v136 = vld [vmem:[#allocation3 + $0x360] sm:$0xff]
    %v137 = vld [vmem:[#allocation3 + $0x368] sm:$0xff]
    %v138 = vld [vmem:[#allocation3 + $0x370] sm:$0xff]
    %v139 = vld [vmem:[#allocation3 + $0x378] sm:$0xff]
    %v140 = vld [vmem:[#allocation3 + $0x380] sm:$0xff]
    %v141 = vld [vmem:[#allocation3 + $0x388] sm:$0xff]
    %v142 = vld [vmem:[#allocation3 + $0x390] sm:$0xff]
    %v143 = vld [vmem:[#allocation3 + $0x398] sm:$0xff]
    %v144 = vld [vmem:[#allocation3 + $0x3a0] sm:$0xff]
    %v145 = vld [vmem:[#allocation3 + $0x3a8] sm:$0xff]
    %v146 = vld [vmem:[#allocation3 + $0x3b0] sm:$0xff]
    %v147 = vld [vmem:[#allocation3 + $0x3b8] sm:$0xff]
    %v148 = vld [vmem:[#allocation3 + $0x3c0] sm:$0xff]
    %v149 = vld [vmem:[#allocation3 + $0x3c8] sm:$0xff]
    %v150 = vld [vmem:[#allocation3 + $0x3d0] sm:$0xff]
    %v151 = vld [vmem:[#allocation3 + $0x3d8] sm:$0xff]
    %v152 = vld [vmem:[#allocation3 + $0x3e0] sm:$0xff]
    %v153 = vld [vmem:[#allocation3 + $0x3e8] sm:$0xff]
    %v154 = vld [vmem:[#allocation3 + $0x3f0] sm:$0xff]
    %v155 = vld [vmem:[#allocation3 + $0x3f8] sm:$0xff]
    %s156 = scalar_lea.vmem [#allocation3], 1024
    %v157 = vld [vmem:[%s156] sm:$0xff]
    %v158 = vld [vmem:[%s156 + $0x8] sm:$0xff]
    %v159 = vld [vmem:[%s156 + $0x10] sm:$0xff]
    %v160 = vld [vmem:[%s156 + $0x18] sm:$0xff]
    %v161 = vld [vmem:[%s156 + $0x20] sm:$0xff]
    %v162 = vld [vmem:[%s156 + $0x28] sm:$0xff]
    %v163 = vld [vmem:[%s156 + $0x30] sm:$0xff]
    %v164 = vld [vmem:[%s156 + $0x38] sm:$0xff]
    %v165 = vld [vmem:[%s156 + $0x40] sm:$0xff]
    %v166 = vld [vmem:[%s156 + $0x48] sm:$0xff]
    %v167 = vld [vmem:[%s156 + $0x50] sm:$0xff]
    %v168 = vld [vmem:[%s156 + $0x58] sm:$0xff]
    %v169 = vld [vmem:[%s156 + $0x60] sm:$0xff]
    %v170 = vld [vmem:[%s156 + $0x68] sm:$0xff]
    %v171 = vld [vmem:[%s156 + $0x70] sm:$0xff]
    %v172 = vld [vmem:[%s156 + $0x78] sm:$0xff]
    %v173 = vld [vmem:[%s156 + $0x80] sm:$0xff]
    %v174 = vld [vmem:[%s156 + $0x88] sm:$0xff]
    %v175 = vld [vmem:[%s156 + $0x90] sm:$0xff]
    %v176 = vld [vmem:[%s156 + $0x98] sm:$0xff]
    %v177 = vld [vmem:[%s156 + $0xa0] sm:$0xff]
    %v178 = vld [vmem:[%s156 + $0xa8] sm:$0xff]
    %v179 = vld [vmem:[%s156 + $0xb0] sm:$0xff]
    %v180 = vld [vmem:[%s156 + $0xb8] sm:$0xff]
    %v181 = vld [vmem:[%s156 + $0xc0] sm:$0xff]
    %v182 = vld [vmem:[%s156 + $0xc8] sm:$0xff]
    %v183 = vld [vmem:[%s156 + $0xd0] sm:$0xff]
    %v184 = vld [vmem:[%s156 + $0xd8] sm:$0xff]
    %v185 = vld [vmem:[%s156 + $0xe0] sm:$0xff]
    %v186 = vld [vmem:[%s156 + $0xe8] sm:$0xff]
    %v187 = vld [vmem:[%s156 + $0xf0] sm:$0xff]
    %v188 = vld [vmem:[%s156 + $0xf8] sm:$0xff]
    %v189 = vld [vmem:[%s156 + $0x100] sm:$0xff]
    %v190 = vld [vmem:[%s156 + $0x108] sm:$0xff]
    %v191 = vld [vmem:[%s156 + $0x110] sm:$0xff]
    %v192 = vld [vmem:[%s156 + $0x118] sm:$0xff]
    %v193 = vld [vmem:[%s156 + $0x120] sm:$0xff]
    %v194 = vld [vmem:[%s156 + $0x128] sm:$0xff]
    %v195 = vld [vmem:[%s156 + $0x130] sm:$0xff]
    %v196 = vld [vmem:[%s156 + $0x138] sm:$0xff]
    %v197 = vld [vmem:[%s156 + $0x140] sm:$0xff]
    %v198 = vld [vmem:[%s156 + $0x148] sm:$0xff]
    %v199 = vld [vmem:[%s156 + $0x150] sm:$0xff]
    %v200 = vld [vmem:[%s156 + $0x158] sm:$0xff]
    %v201 = vld [vmem:[%s156 + $0x160] sm:$0xff]
    %v202 = vld [vmem:[%s156 + $0x168] sm:$0xff]
    %v203 = vld [vmem:[%s156 + $0x170] sm:$0xff]
    %v204 = vld [vmem:[%s156 + $0x178] sm:$0xff]
    %v205 = vld [vmem:[%s156 + $0x180] sm:$0xff]
    %v206 = vld [vmem:[%s156 + $0x188] sm:$0xff]
    %v207 = vld [vmem:[%s156 + $0x190] sm:$0xff]
    %v208 = vld [vmem:[%s156 + $0x198] sm:$0xff]
    %v209 = vld [vmem:[%s156 + $0x1a0] sm:$0xff]
    %v210 = vld [vmem:[%s156 + $0x1a8] sm:$0xff]
    %v211 = vld [vmem:[%s156 + $0x1b0] sm:$0xff]
    %v212 = vld [vmem:[%s156 + $0x1b8] sm:$0xff]
    %v213 = vld [vmem:[%s156 + $0x1c0] sm:$0xff]
    %v214 = vld [vmem:[%s156 + $0x1c8] sm:$0xff]
    %v215 = vld [vmem:[%s156 + $0x1d0] sm:$0xff]
    %v216 = vld [vmem:[%s156 + $0x1d8] sm:$0xff]
    %v217 = vld [vmem:[%s156 + $0x1e0] sm:$0xff]
    %v218 = vld [vmem:[%s156 + $0x1e8] sm:$0xff]
    %v219 = vld [vmem:[%s156 + $0x1f0] sm:$0xff]
    %v220 = vld [vmem:[%s156 + $0x1f8] sm:$0xff]
    %v221 = vld [vmem:[%s156 + $0x200] sm:$0xff]
    %v222 = vld [vmem:[%s156 + $0x208] sm:$0xff]
    %v223 = vld [vmem:[%s156 + $0x210] sm:$0xff]
    %v224 = vld [vmem:[%s156 + $0x218] sm:$0xff]
    %v225 = vld [vmem:[%s156 + $0x220] sm:$0xff]
    %v226 = vld [vmem:[%s156 + $0x228] sm:$0xff]
    %v227 = vld [vmem:[%s156 + $0x230] sm:$0xff]
    %v228 = vld [vmem:[%s156 + $0x238] sm:$0xff]
    %v229 = vld [vmem:[%s156 + $0x240] sm:$0xff]
    %v230 = vld [vmem:[%s156 + $0x248] sm:$0xff]
    %v231 = vld [vmem:[%s156 + $0x250] sm:$0xff]
    %v232 = vld [vmem:[%s156 + $0x258] sm:$0xff]
    %v233 = vld [vmem:[%s156 + $0x260] sm:$0xff]
    %v234 = vld [vmem:[%s156 + $0x268] sm:$0xff]
    %v235 = vld [vmem:[%s156 + $0x270] sm:$0xff]
    %v236 = vld [vmem:[%s156 + $0x278] sm:$0xff]
    %v237 = vld [vmem:[%s156 + $0x280] sm:$0xff]
    %v238 = vld [vmem:[%s156 + $0x288] sm:$0xff]
    %v239 = vld [vmem:[%s156 + $0x290] sm:$0xff]
    %v240 = vld [vmem:[%s156 + $0x298] sm:$0xff]
    %v241 = vld [vmem:[%s156 + $0x2a0] sm:$0xff]
    %v242 = vld [vmem:[%s156 + $0x2a8] sm:$0xff]
    %v243 = vld [vmem:[%s156 + $0x2b0] sm:$0xff]
    %v244 = vld [vmem:[%s156 + $0x2b8] sm:$0xff]
    %v245 = vld [vmem:[%s156 + $0x2c0] sm:$0xff]
    %v246 = vld [vmem:[%s156 + $0x2c8] sm:$0xff]
    %v247 = vld [vmem:[%s156 + $0x2d0] sm:$0xff]
    %v248 = vld [vmem:[%s156 + $0x2d8] sm:$0xff]
    %v249 = vld [vmem:[%s156 + $0x2e0] sm:$0xff]
    %v250 = vld [vmem:[%s156 + $0x2e8] sm:$0xff]
    %v251 = vld [vmem:[%s156 + $0x2f0] sm:$0xff]
    %v252 = vld [vmem:[%s156 + $0x2f8] sm:$0xff]
    %v253 = vld [vmem:[%s156 + $0x300] sm:$0xff]
    %v254 = vld [vmem:[%s156 + $0x308] sm:$0xff]
    %v255 = vld [vmem:[%s156 + $0x310] sm:$0xff]
    %v256 = vld [vmem:[%s156 + $0x318] sm:$0xff]
    %v257 = vld [vmem:[%s156 + $0x320] sm:$0xff]
    %v258 = vld [vmem:[%s156 + $0x328] sm:$0xff]
    %v259 = vld [vmem:[%s156 + $0x330] sm:$0xff]
    %v260 = vld [vmem:[%s156 + $0x338] sm:$0xff]
    %v261 = vld [vmem:[%s156 + $0x340] sm:$0xff]
    %v262 = vld [vmem:[%s156 + $0x348] sm:$0xff]
    %v263 = vld [vmem:[%s156 + $0x350] sm:$0xff]
    %v264 = vld [vmem:[%s156 + $0x358] sm:$0xff]
    %v265 = vld [vmem:[%s156 + $0x360] sm:$0xff]
    %v266 = vld [vmem:[%s156 + $0x368] sm:$0xff]
    %v267 = vld [vmem:[%s156 + $0x370] sm:$0xff]
    %v268 = vld [vmem:[%s156 + $0x378] sm:$0xff]
    %v269 = vld [vmem:[%s156 + $0x380] sm:$0xff]
    %v270 = vld [vmem:[%s156 + $0x388] sm:$0xff]
    %v271 = vld [vmem:[%s156 + $0x390] sm:$0xff]
    %v272 = vld [vmem:[%s156 + $0x398] sm:$0xff]
    %v273 = vld [vmem:[%s156 + $0x3a0] sm:$0xff]
    %v274 = vld [vmem:[%s156 + $0x3a8] sm:$0xff]
    %v275 = vld [vmem:[%s156 + $0x3b0] sm:$0xff]
    %v276 = vld [vmem:[%s156 + $0x3b8] sm:$0xff]
    %v277 = vld [vmem:[%s156 + $0x3c0] sm:$0xff]
    %v278 = vld [vmem:[%s156 + $0x3c8] sm:$0xff]
    %v279 = vld [vmem:[%s156 + $0x3d0] sm:$0xff]
    %v280 = vld [vmem:[%s156 + $0x3d8] sm:$0xff]
    %v281 = vld [vmem:[%s156 + $0x3e0] sm:$0xff]
    %v282 = vld [vmem:[%s156 + $0x3e8] sm:$0xff]
    %v283 = vld [vmem:[%s156 + $0x3f0] sm:$0xff]
    %v284 = vld [vmem:[%s156 + $0x3f8] sm:$0xff]
    %v285 = vsub.f32 %v28, %v157
    %v286 = vsub.f32 %v29, %v158
    %v287 = vsub.f32 %v30, %v159
    %v288 = vsub.f32 %v31, %v160
    %v289 = vsub.f32 %v32, %v161
    %v290 = vsub.f32 %v33, %v162
    %v291 = vsub.f32 %v34, %v163
    %v292 = vsub.f32 %v35, %v164
    %v293 = vsub.f32 %v36, %v165
    %v294 = vsub.f32 %v37, %v166
    %v295 = vsub.f32 %v38, %v167
    %v296 = vsub.f32 %v39, %v168
    %v297 = vsub.f32 %v40, %v169
    %v298 = vsub.f32 %v41, %v170
    %v299 = vsub.f32 %v42, %v171
    %v300 = vsub.f32 %v43, %v172
    %v301 = vsub.f32 %v44, %v173
    %v302 = vsub.f32 %v45, %v174
    %v303 = vsub.f32 %v46, %v175
    %v304 = vsub.f32 %v47, %v176
    %v305 = vsub.f32 %v48, %v177
    %v306 = vsub.f32 %v49, %v178
    %v307 = vsub.f32 %v50, %v179
    %v308 = vsub.f32 %v51, %v180
    %v309 = vsub.f32 %v52, %v181
    %v310 = vsub.f32 %v53, %v182
    %v311 = vsub.f32 %v54, %v183
    %v312 = vsub.f32 %v55, %v184
    %v313 = vsub.f32 %v56, %v185
    %v314 = vsub.f32 %v57, %v186
    %v315 = vsub.f32 %v58, %v187
    %v316 = vsub.f32 %v59, %v188
    %v317 = vsub.f32 %v60, %v189
    %v318 = vsub.f32 %v61, %v190
    %v319 = vsub.f32 %v62, %v191
    %v320 = vsub.f32 %v63, %v192
    %v321 = vsub.f32 %v64, %v193
    %v322 = vsub.f32 %v65, %v194
    %v323 = vsub.f32 %v66, %v195
    %v324 = vsub.f32 %v67, %v196
    %v325 = vsub.f32 %v68, %v197
    %v326 = vsub.f32 %v69, %v198
    %v327 = vsub.f32 %v70, %v199
    %v328 = vsub.f32 %v71, %v200
    %v329 = vsub.f32 %v72, %v201
    %v330 = vsub.f32 %v73, %v202
    %v331 = vsub.f32 %v74, %v203
    %v332 = vsub.f32 %v75, %v204
    %v333 = vsub.f32 %v76, %v205
    %v334 = vsub.f32 %v77, %v206
    %v335 = vsub.f32 %v78, %v207
    %v336 = vsub.f32 %v79, %v208
    %v337 = vsub.f32 %v80, %v209
    %v338 = vsub.f32 %v81, %v210
    %v339 = vsub.f32 %v82, %v211
    %v340 = vsub.f32 %v83, %v212
    %v341 = vsub.f32 %v84, %v213
    %v342 = vsub.f32 %v85, %v214
    %v343 = vsub.f32 %v86, %v215
    %v344 = vsub.f32 %v87, %v216
    %v345 = vsub.f32 %v88, %v217
    %v346 = vsub.f32 %v89, %v218
    %v347 = vsub.f32 %v90, %v219
    %v348 = vsub.f32 %v91, %v220
    %v349 = vsub.f32 %v92, %v221
    %v350 = vsub.f32 %v93, %v222
    %v351 = vsub.f32 %v94, %v223
    %v352 = vsub.f32 %v95, %v224
    %v353 = vsub.f32 %v96, %v225
    %v354 = vsub.f32 %v97, %v226
    %v355 = vsub.f32 %v98, %v227
    %v356 = vsub.f32 %v99, %v228
    %v357 = vsub.f32 %v100, %v229
    %v358 = vsub.f32 %v101, %v230
    %v359 = vsub.f32 %v102, %v231
    %v360 = vsub.f32 %v103, %v232
    %v361 = vsub.f32 %v104, %v233
    %v362 = vsub.f32 %v105, %v234
    %v363 = vsub.f32 %v106, %v235
    %v364 = vsub.f32 %v107, %v236
    %v365 = vsub.f32 %v108, %v237
    %v366 = vsub.f32 %v109, %v238
    %v367 = vsub.f32 %v110, %v239
    %v368 = vsub.f32 %v111, %v240
    %v369 = vsub.f32 %v112, %v241
    %v370 = vsub.f32 %v113, %v242
    %v371 = vsub.f32 %v114, %v243
    %v372 = vsub.f32 %v115, %v244
    %v373 = vsub.f32 %v116, %v245
    %v374 = vsub.f32 %v117, %v246
    %v375 = vsub.f32 %v118, %v247
    %v376 = vsub.f32 %v119, %v248
    %v377 = vsub.f32 %v120, %v249
    %v378 = vsub.f32 %v121, %v250
    %v379 = vsub.f32 %v122, %v251
    %v380 = vsub.f32 %v123, %v252
    %v381 = vsub.f32 %v124, %v253
    %v382 = vsub.f32 %v125, %v254
    %v383 = vsub.f32 %v126, %v255
    %v384 = vsub.f32 %v127, %v256
    %v385 = vsub.f32 %v128, %v257
    %v386 = vsub.f32 %v129, %v258
    %v387 = vsub.f32 %v130, %v259
    %v388 = vsub.f32 %v131, %v260
    %v389 = vsub.f32 %v132, %v261
    %v390 = vsub.f32 %v133, %v262
    %v391 = vsub.f32 %v134, %v263
    %v392 = vsub.f32 %v135, %v264
    %v393 = vsub.f32 %v136, %v265
    %v394 = vsub.f32 %v137, %v266
    %v395 = vsub.f32 %v138, %v267
    %v396 = vsub.f32 %v139, %v268
    %v397 = vsub.f32 %v140, %v269
    %v398 = vsub.f32 %v141, %v270
    %v399 = vsub.f32 %v142, %v271
    %v400 = vsub.f32 %v143, %v272
    %v401 = vsub.f32 %v144, %v273
    %v402 = vsub.f32 %v145, %v274
    %v403 = vsub.f32 %v146, %v275
    %v404 = vsub.f32 %v147, %v276
    %v405 = vsub.f32 %v148, %v277
    %v406 = vsub.f32 %v149, %v278
    %v407 = vsub.f32 %v150, %v279
    %v408 = vsub.f32 %v151, %v280
    %v409 = vsub.f32 %v152, %v281
    %v410 = vsub.f32 %v153, %v282
    %v411 = vsub.f32 %v154, %v283
    %v412 = vsub.f32 %v155, %v284
    %s413 = ssub.f32 0.0, %s27
    %v414 = vstv %s413
    %v415 = vmax.f32 %v285, %v414
    %v416 = vmax.f32 %v286, %v414
    %v417 = vmax.f32 %v287, %v414
    %v418 = vmax.f32 %v288, %v414
    %v419 = vmax.f32 %v289, %v414
    %v420 = vmax.f32 %v290, %v414
    %v421 = vmax.f32 %v291, %v414
    %v422 = vmax.f32 %v292, %v414
    %v423 = vmax.f32 %v293, %v414
    %v424 = vmax.f32 %v294, %v414
    %v425 = vmax.f32 %v295, %v414
    %v426 = vmax.f32 %v296, %v414
    %v427 = vmax.f32 %v297, %v414
    %v428 = vmax.f32 %v298, %v414
    %v429 = vmax.f32 %v299, %v414
    %v430 = vmax.f32 %v300, %v414
    %v431 = vmax.f32 %v301, %v414
    %v432 = vmax.f32 %v302, %v414
    %v433 = vmax.f32 %v303, %v414
    %v434 = vmax.f32 %v304, %v414
    %v435 = vmax.f32 %v305, %v414
    %v436 = vmax.f32 %v306, %v414
    %v437 = vmax.f32 %v307, %v414
    %v438 = vmax.f32 %v308, %v414
    %v439 = vmax.f32 %v309, %v414
    %v440 = vmax.f32 %v310, %v414
    %v441 = vmax.f32 %v311, %v414
    %v442 = vmax.f32 %v312, %v414
    %v443 = vmax.f32 %v313, %v414
    %v444 = vmax.f32 %v314, %v414
    %v445 = vmax.f32 %v315, %v414
    %v446 = vmax.f32 %v316, %v414
    %v447 = vmax.f32 %v317, %v414
    %v448 = vmax.f32 %v318, %v414
    %v449 = vmax.f32 %v319, %v414
    %v450 = vmax.f32 %v320, %v414
    %v451 = vmax.f32 %v321, %v414
    %v452 = vmax.f32 %v322, %v414
    %v453 = vmax.f32 %v323, %v414
    %v454 = vmax.f32 %v324, %v414
    %v455 = vmax.f32 %v325, %v414
    %v456 = vmax.f32 %v326, %v414
    %v457 = vmax.f32 %v327, %v414
    %v458 = vmax.f32 %v328, %v414
    %v459 = vmax.f32 %v329, %v414
    %v460 = vmax.f32 %v330, %v414
    %v461 = vmax.f32 %v331, %v414
    %v462 = vmax.f32 %v332, %v414
    %v463 = vmax.f32 %v333, %v414
    %v464 = vmax.f32 %v334, %v414
    %v465 = vmax.f32 %v335, %v414
    %v466 = vmax.f32 %v336, %v414
    %v467 = vmax.f32 %v337, %v414
    %v468 = vmax.f32 %v338, %v414
    %v469 = vmax.f32 %v339, %v414
    %v470 = vmax.f32 %v340, %v414
    %v471 = vmax.f32 %v341, %v414
    %v472 = vmax.f32 %v342, %v414
    %v473 = vmax.f32 %v343, %v414
    %v474 = vmax.f32 %v344, %v414
    %v475 = vmax.f32 %v345, %v414
    %v476 = vmax.f32 %v346, %v414
    %v477 = vmax.f32 %v347, %v414
    %v478 = vmax.f32 %v348, %v414
    %v479 = vmax.f32 %v349, %v414
    %v480 = vmax.f32 %v350, %v414
    %v481 = vmax.f32 %v351, %v414
    %v482 = vmax.f32 %v352, %v414
    %v483 = vmax.f32 %v353, %v414
    %v484 = vmax.f32 %v354, %v414
    %v485 = vmax.f32 %v355, %v414
    %v486 = vmax.f32 %v356, %v414
    %v487 = vmax.f32 %v357, %v414
    %v488 = vmax.f32 %v358, %v414
    %v489 = vmax.f32 %v359, %v414
    %v490 = vmax.f32 %v360, %v414
    %v491 = vmax.f32 %v361, %v414
    %v492 = vmax.f32 %v362, %v414
    %v493 = vmax.f32 %v363, %v414
    %v494 = vmax.f32 %v364, %v414
    %v495 = vmax.f32 %v365, %v414
    %v496 = vmax.f32 %v366, %v414
    %v497 = vmax.f32 %v367, %v414
    %v498 = vmax.f32 %v368, %v414
    %v499 = vmax.f32 %v369, %v414
    %v500 = vmax.f32 %v370, %v414
    %v501 = vmax.f32 %v371, %v414
    %v502 = vmax.f32 %v372, %v414
    %v503 = vmax.f32 %v373, %v414
    %v504 = vmax.f32 %v374, %v414
    %v505 = vmax.f32 %v375, %v414
    %v506 = vmax.f32 %v376, %v414
    %v507 = vmax.f32 %v377, %v414
    %v508 = vmax.f32 %v378, %v414
    %v509 = vmax.f32 %v379, %v414
    %v510 = vmax.f32 %v380, %v414
    %v511 = vmax.f32 %v381, %v414
    %v512 = vmax.f32 %v382, %v414
    %v513 = vmax.f32 %v383, %v414
    %v514 = vmax.f32 %v384, %v414
    %v515 = vmax.f32 %v385, %v414
    %v516 = vmax.f32 %v386, %v414
    %v517 = vmax.f32 %v387, %v414
    %v518 = vmax.f32 %v388, %v414
    %v519 = vmax.f32 %v389, %v414
    %v520 = vmax.f32 %v390, %v414
    %v521 = vmax.f32 %v391, %v414
    %v522 = vmax.f32 %v392, %v414
    %v523 = vmax.f32 %v393, %v414
    %v524 = vmax.f32 %v394, %v414
    %v525 = vmax.f32 %v395, %v414
    %v526 = vmax.f32 %v396, %v414
    %v527 = vmax.f32 %v397, %v414
    %v528 = vmax.f32 %v398, %v414
    %v529 = vmax.f32 %v399, %v414
    %v530 = vmax.f32 %v400, %v414
    %v531 = vmax.f32 %v401, %v414
    %v532 = vmax.f32 %v402, %v414
    %v533 = vmax.f32 %v403, %v414
    %v534 = vmax.f32 %v404, %v414
    %v535 = vmax.f32 %v405, %v414
    %v536 = vmax.f32 %v406, %v414
    %v537 = vmax.f32 %v407, %v414
    %v538 = vmax.f32 %v408, %v414
    %v539 = vmax.f32 %v409, %v414
    %v540 = vmax.f32 %v410, %v414
    %v541 = vmax.f32 %v411, %v414
    %v542 = vmax.f32 %v412, %v414
    %v543 = vadd.f32 %v415, %v416
    %v544 = vadd.f32 %v543, %v417
    %v545 = vadd.f32 %v544, %v418
    %v546 = vadd.f32 %v545, %v419
    %v547 = vadd.f32 %v546, %v420
    %v548 = vadd.f32 %v547, %v421
    %v549 = vadd.f32 %v548, %v422
    %v550 = vadd.f32 %v549, %v423
    %v551 = vadd.f32 %v550, %v424
    %v552 = vadd.f32 %v551, %v425
    %v553 = vadd.f32 %v552, %v426
    %v554 = vadd.f32 %v553, %v427
    %v555 = vadd.f32 %v554, %v428
    %v556 = vadd.f32 %v555, %v429
    %v557 = vadd.f32 %v556, %v430
    %v558 = vadd.f32 %v557, %v431
    %v559 = vadd.f32 %v558, %v432
    %v560 = vadd.f32 %v559, %v433
    %v561 = vadd.f32 %v560, %v434
    %v562 = vadd.f32 %v561, %v435
    %v563 = vadd.f32 %v562, %v436
    %v564 = vadd.f32 %v563, %v437
    %v565 = vadd.f32 %v564, %v438
    %v566 = vadd.f32 %v565, %v439
    %v567 = vadd.f32 %v566, %v440
    %v568 = vadd.f32 %v567, %v441
    %v569 = vadd.f32 %v568, %v442
    %v570 = vadd.f32 %v569, %v443
    %v571 = vadd.f32 %v570, %v444
    %v572 = vadd.f32 %v571, %v445
    %v573 = vadd.f32 %v572, %v446
    %v574 = vadd.f32 %v573, %v447
    %v575 = vadd.f32 %v574, %v448
    %v576 = vadd.f32 %v575, %v449
    %v577 = vadd.f32 %v576, %v450
    %v578 = vadd.f32 %v577, %v451
    %v579 = vadd.f32 %v578, %v452
    %v580 = vadd.f32 %v579, %v453
    %v581 = vadd.f32 %v580, %v454
    %v582 = vadd.f32 %v581, %v455
    %v583 = vadd.f32 %v582, %v456
    %v584 = vadd.f32 %v583, %v457
    %v585 = vadd.f32 %v584, %v458
    %v586 = vadd.f32 %v585, %v459
    %v587 = vadd.f32 %v586, %v460
    %v588 = vadd.f32 %v587, %v461
    %v589 = vadd.f32 %v588, %v462
    %v590 = vadd.f32 %v589, %v463
    %v591 = vadd.f32 %v590, %v464
    %v592 = vadd.f32 %v591, %v465
    %v593 = vadd.f32 %v592, %v466
    %v594 = vadd.f32 %v593, %v467
    %v595 = vadd.f32 %v594, %v468
    %v596 = vadd.f32 %v595, %v469
    %v597 = vadd.f32 %v596, %v470
    %v598 = vadd.f32 %v597, %v471
    %v599 = vadd.f32 %v598, %v472
    %v600 = vadd.f32 %v599, %v473
    %v601 = vadd.f32 %v600, %v474
    %v602 = vadd.f32 %v601, %v475
    %v603 = vadd.f32 %v602, %v476
    %v604 = vadd.f32 %v603, %v477
    %v605 = vadd.f32 %v604, %v478
    %v606 = vadd.f32 %v605, %v479
    %v607 = vadd.f32 %v606, %v480
    %v608 = vadd.f32 %v607, %v481
    %v609 = vadd.f32 %v608, %v482
    %v610 = vadd.f32 %v609, %v483
    %v611 = vadd.f32 %v610, %v484
    %v612 = vadd.f32 %v611, %v485
    %v613 = vadd.f32 %v612, %v486
    %v614 = vadd.f32 %v613, %v487
    %v615 = vadd.f32 %v614, %v488
    %v616 = vadd.f32 %v615, %v489
    %v617 = vadd.f32 %v616, %v490
    %v618 = vadd.f32 %v617, %v491
    %v619 = vadd.f32 %v618, %v492
    %v620 = vadd.f32 %v619, %v493
    %v621 = vadd.f32 %v620, %v494
    %v622 = vadd.f32 %v621, %v495
    %v623 = vadd.f32 %v622, %v496
    %v624 = vadd.f32 %v623, %v497
    %v625 = vadd.f32 %v624, %v498
    %v626 = vadd.f32 %v625, %v499
    %v627 = vadd.f32 %v626, %v500
    %v628 = vadd.f32 %v627, %v501
    %v629 = vadd.f32 %v628, %v502
    %v630 = vadd.f32 %v629, %v503
    %v631 = vadd.f32 %v630, %v504
    %v632 = vadd.f32 %v631, %v505
    %v633 = vadd.f32 %v632, %v506
    %v634 = vadd.f32 %v633, %v507
    %v635 = vadd.f32 %v634, %v508
    %v636 = vadd.f32 %v635, %v509
    %v637 = vadd.f32 %v636, %v510
    %v638 = vadd.f32 %v637, %v511
    %v639 = vadd.f32 %v638, %v512
    %v640 = vadd.f32 %v639, %v513
    %v641 = vadd.f32 %v640, %v514
    %v642 = vadd.f32 %v641, %v515
    %v643 = vadd.f32 %v642, %v516
    %v644 = vadd.f32 %v643, %v517
    %v645 = vadd.f32 %v644, %v518
    %v646 = vadd.f32 %v645, %v519
    %v647 = vadd.f32 %v646, %v520
    %v648 = vadd.f32 %v647, %v521
    %v649 = vadd.f32 %v648, %v522
    %v650 = vadd.f32 %v649, %v523
    %v651 = vadd.f32 %v650, %v524
    %v652 = vadd.f32 %v651, %v525
    %v653 = vadd.f32 %v652, %v526
    %v654 = vadd.f32 %v653, %v527
    %v655 = vadd.f32 %v654, %v528
    %v656 = vadd.f32 %v655, %v529
    %v657 = vadd.f32 %v656, %v530
    %v658 = vadd.f32 %v657, %v531
    %v659 = vadd.f32 %v658, %v532
    %v660 = vadd.f32 %v659, %v533
    %v661 = vadd.f32 %v660, %v534
    %v662 = vadd.f32 %v661, %v535
    %v663 = vadd.f32 %v662, %v536
    %v664 = vadd.f32 %v663, %v537
    %v665 = vadd.f32 %v664, %v538
    %v666 = vadd.f32 %v665, %v539
    %v667 = vadd.f32 %v666, %v540
    %v668 = vadd.f32 %v667, %v541
    %v669 = vadd.f32 %v668, %v542
    %670 = vst [vmem:[#allocation6] sm:$0xff] %v669
    // Predicated region
    $region14: #{tpu_custom_call.1} parent=1 // pred_check
      _
    $region15: #{tpu_custom_call.1} parent=1 // pred_check_branch
      %672 = sbr.rel (0) target = $region17
    $region16: #{tpu_custom_call.1} parent=1 // pred_region
      %s674 = ssub.s32 128, 128
      %675 = vsyncadd [#allocation5], %s674
      %s677 = sshll.u32 [#allocation6], 4
      %s678 = int_to_ptr.vmem [resolvable:$true] %s677
      %680 = dma.vmem_to_hbm [thread:$0]  %s678, 128, %s2, [#allocation5]
    $region17: #{tpu_custom_call.1} parent=1 // pred_fallthru
      _
    // Predicated region
    $region18: #{tpu_custom_call.1} parent=1 // pred_check
      _
    $region19: #{tpu_custom_call.1} parent=1 // pred_check_branch
      %682 = sbr.rel (0) target = $region21
    $region20: #{tpu_custom_call.1} parent=1 // pred_region
      %683 = dma.done [#allocation5], 128
    $region21: #{tpu_custom_call.1} parent=1 // pred_fallthru
      _
    %684 = vsyncpa [#allocation4], 1
    %685 = vsyncpa [#allocation5], 1

</llo_original>
